<compile_context>
chip_gen: v7x
topology: tpu7x:2x2x1
jax: 0.10.0
libtpu: 0.0.40
codegen_flags: <defaults>
</compile_context>

<pallas_src>
import functools

import jax
import jax.numpy as jnp
from jax import lax
from jax.experimental import pallas as pl
from jax.experimental.pallas import tpu as pltpu


def _polar_cnn_kernel(filter_sizes, filter_number, x_ref, wcol_ref, cb_ref,
                      fcw_ref, fcb_ref, out_ref):
    """x_ref: (n_branch, bB, L, D) bf16; wcol_ref: (Kmax*D, n_fs*F) bf16.

    cb_ref: (1, n_fs*F) f32; fcw_ref: (n_fs*F, out_pad) f32; fcb_ref: (1, out_pad) f32.
    out_ref: (bB, out_pad) f32 (out_pad = 128-lane padded output dim).
    """
    n_branch, bB, L, D = x_ref.shape
    F = filter_number
    n_fs = len(filter_sizes)
    C = n_fs * F
    Kmax = max(filter_sizes)
    G = n_branch * bB
    M = G * L

    # ---- im2col: flat row r = (g, t) holds [x[g,t], x[g,t+1], ..., x[g,t+Kmax-1]].
    # Rolls wrap across row-group boundaries; the contaminated rows are exactly
    # the invalid time steps masked below (t >= L - k implies t >= L - K_i + 1
    # for every filter that uses tap k).  Rolls/concat run in f32 (plain 32-bit
    # sublane rotate), operands are cast to bf16 for the MXU.
    xf = x_ref[...].reshape(M, D).astype(jnp.float32)
    chunks = [xf]
    for k in range(1, Kmax):
        chunks.append(pltpu.roll(xf, shift=M - k, axis=0))       # row r -> xf[(r+k) % M]
    xcol = jnp.concatenate(chunks, axis=1).astype(jnp.bfloat16)  # (M, Kmax*D)

    # ---- every filter size / tap / branch / row in ONE deep MXU contraction ----
    y = jnp.dot(xcol, wcol_ref[...], preferred_element_type=jnp.float32)  # (M, C) f32

    # Per-branch bias + ReLU on the full C-lane block (f32: v5e-friendly).
    act = jnp.maximum(y + cb_ref[...], 0.0)

    # Mask invalid trailing time steps (t >= L - K_i + 1) with 0 before pooling.
    t_idx = lax.broadcasted_iota(jnp.int32, (L, C), 0)
    col_idx = lax.broadcasted_iota(jnp.int32, (L, C), 1)
    lout = jnp.zeros((L, C), jnp.int32)
    for i, K in enumerate(filter_sizes):
        in_blk = (col_idx >= i * F) & (col_idx < (i + 1) * F)
        lout = jnp.where(in_blk, L - K + 1, lout)
    valid = t_idx < lout                                         # (L, C)

    act = act.reshape(G, L, C)
    act = jnp.where(valid[None], act, 0.0)
    if n_branch == 2:                                            # 'multi': relu(base)+relu(add)
        act = act[:bB] + act[bB:]
    pooled = jnp.max(act, axis=1)                                # (bB, C) max-pool over time

    # ---- FC + bias: one matmul, one lane-dense full-block store ----
    out = jnp.dot(pooled, fcw_ref[...],
                  preferred_element_type=jnp.float32) + fcb_ref[...]
    out_ref[...] = out.astype(out_ref.dtype)


def _lane_pad(n):
    return -(-n // 128) * 128


def polar_cnn_forward(text, params, *, filter_sizes, mode, batch_tile=None):
    """Pallas implementation of PolarCNN.forward (inference)."""
    B, L = text.shape
    D = params["emb_base"].shape[1]
    F = params["conv_b_0"].shape[0]
    n_fs = len(filter_sizes)
    C = n_fs * F
    Kmax = max(filter_sizes)
    out_dim = params["fc_b"].shape[0]
    out_pad = _lane_pad(out_dim)                     # lane-dense FC output / store
    assert L >= Kmax

    # Embedding gather stays in JAX (tables are tiny).
    # TODO(synk): at production B*L, fuse the gather into the kernel (resident
    # VMEM tables + scalar-prefetched token ids) to skip the HBM round-trip of
    # the (n_branch, B, L, D) activations.
    base = jnp.take(params["emb_base"], text, axis=0)
    if mode == "multi":
        add = jnp.take(params["emb_add"], text, axis=0)
        x = jnp.stack([base, add], axis=0)           # (2, B, L, D), branch-major
    else:                                            # 'static' / 'nonstatic'
        x = base[None]                               # (1, B, L, D)
    n_branch = x.shape[0]
    x = x.astype(jnp.bfloat16)                       # MXU operands bf16, f32 accum

    # Block-structured im2col conv weight (Kmax*D, n_fs*F): rows [k*D:(k+1)*D]
    # of column block i hold tap k of filter i (torch conv_w layout (F, D, K));
    # rows for taps k >= K_i are zero so shorter filters ignore the extra taps.
    blocks = []
    for i, K in enumerate(filter_sizes):
        w = jnp.transpose(params[f"conv_w_{i}"], (2, 1, 0)).reshape(K * D, F)
        if K < Kmax:
            w = jnp.concatenate(
                [w, jnp.zeros(((Kmax - K) * D, F), w.dtype)], axis=0)
        blocks.append(w)
    wcol = jnp.concatenate(blocks, axis=1).astype(jnp.bfloat16)      # (Kmax*D, C)

    cb = jnp.concatenate(
        [params[f"conv_b_{i}"] for i in range(n_fs)]).astype(jnp.float32)[None, :]
    fcw = jnp.zeros((C, out_pad), jnp.float32).at[:, :out_dim].set(
        params["fc_w"].T.astype(jnp.float32))                        # zero-padded lanes
    fcb = jnp.zeros((1, out_pad), jnp.float32).at[:, :out_dim].set(
        params["fc_b"].astype(jnp.float32)[None, :])

    # --- batch tile: size against a conservative per-row VMEM working set ----
    # (lane-padded): x block (bf16, double-buffered) + f32/bf16 im2col + f32
    # conv/act block.  Prefer >= 2 grid steps when the batch allows it so the
    # input DMA pipelines and v7x's two TensorCores both get work.
    per_row = n_branch * L * (
        2 * _lane_pad(D) * 2                  # x double-buffer (bf16)
        + _lane_pad(Kmax * D) * (4 + 2)       # im2col f32 + bf16 copy
        + 2 * _lane_pad(C) * 4)               # y / act (f32)
    if batch_tile is None:
        budget = 6 << 20                      # well under 16/32/32 MiB scoped VMEM
        cap = max(1, budget // per_row)
        divs = [d for d in range(1, B + 1)
                if B % d == 0 and (d == B or d % 8 == 0)]
        fit = [d for d in divs if d <= cap] or [min(divs)]
        multi_step = [d for d in fit if B // d >= 2]
        bB = max(multi_step) if (multi_step and B >= 16) else max(fit)
    else:
        bB = batch_tile
    assert B % bB == 0 and (bB == B or bB % 8 == 0), (B, bB)
    grid = (B // bB,)

    vmem_limit = 32 << 20
    weight_bytes = 2 * (wcol.size * 2 + fcw.size * 4 + cb.size * 4 + fcb.size * 4)
    est_vmem = per_row * bB + weight_bytes + 2 * bB * out_pad * 4
    assert est_vmem < vmem_limit, (est_vmem, vmem_limit)

    kernel = functools.partial(_polar_cnn_kernel, tuple(filter_sizes), F)

    flops = 2 * n_branch * B * L * (Kmax * D) * C + 2 * B * C * out_pad
    bytes_accessed = (x.size * 2 + wcol.size * 2
                      + (cb.size + fcw.size + fcb.size) * 4 + B * out_pad * 4)

    out = pl.pallas_call(
        kernel,
        out_shape=jax.ShapeDtypeStruct((B, out_pad), jnp.float32),
        grid_spec=pltpu.PrefetchScalarGridSpec(
            num_scalar_prefetch=0,
            grid=grid,
            in_specs=[
                pl.BlockSpec((n_branch, bB, L, D), lambda i: (0, i, 0, 0)),
                pl.BlockSpec((Kmax * D, C), lambda i: (0, 0)),
                pl.BlockSpec((1, C), lambda i: (0, 0)),
                pl.BlockSpec((C, out_pad), lambda i: (0, 0)),
                pl.BlockSpec((1, out_pad), lambda i: (0, 0)),
            ],
            out_specs=pl.BlockSpec((bB, out_pad), lambda i: (i, 0)),
        ),
        compiler_params=pltpu.CompilerParams(
            dimension_semantics=("parallel",),
            vmem_limit_bytes=vmem_limit),
        cost_estimate=pl.CostEstimate(
            flops=flops, transcendentals=0, bytes_accessed=bytes_accessed),
    )(x, wcol, cb, fcw, fcb)
    # TODO(synk): nn.Dropout is identity at inference; training-mode dropout
    # (pltpu.prng_* masking) is not implemented here.
    return out[:, :out_dim]                  # drop the zero-padded output lanes


def polar_cnn_reference(text, params, *, filter_sizes, mode):
    """Pure-JAX f32 reference mirroring the PyTorch forward (eval mode)."""
    def branch(emb_table):
        emb = jnp.take(emb_table, text, axis=0)          # (B, L, D)
        x = jnp.transpose(emb, (0, 2, 1))                # (B, D, L) == NCL
        outs = []
        for i in range(len(filter_sizes)):
            w = params[f"conv_w_{i}"]                    # (F, D, K)
            b = params[f"conv_b_{i}"]
            y = lax.conv_general_dilated(
                x, w, window_strides=(1,), padding="VALID",
                dimension_numbers=("NCH", "OIH", "NCH"))
            outs.append(jax.nn.relu(y + b[None, :, None]))
        return outs

    conved = branch(params["emb_base"])
    if mode == "multi":
        conved2 = branch(params["emb_add"])
        conved = [a + b for a, b in zip(conved, conved2)]
    pooled = [jnp.max(c, axis=2) for c in conved]        # max_pool1d over time
    cat = jnp.concatenate(pooled, axis=1)                # dropout == identity
    return cat @ params["fc_w"].T + params["fc_b"]


if __name__ == "__main__":
    # args: embedding_dim=32, filter_number=32, filter_size=[3,4,5],
    #       output_dim=2, dropout_rate=0.5, cnn_mode='multi'
    vocab_size, pad_idx = 50, 0
    embedding_dim, filter_number = 32, 32
    filter_sizes = (3, 4, 5)
    output_dim = 2
    B, L = 2, 16

    key = jax.random.PRNGKey(0)
    ks = jax.random.split(key, 10)
    params = {
        "emb_base": (0.1 * jax.random.normal(
            ks[0], (vocab_size, embedding_dim), jnp.float32)
        ).at[pad_idx].set(0.0),                               # padding_idx row = 0
        "emb_add": (0.1 * jax.random.normal(
            ks[1], (vocab_size, embedding_dim), jnp.float32)
        ).at[pad_idx].set(0.0),
        "fc_w": 0.1 * jax.random.normal(
            ks[2], (output_dim, len(filter_sizes) * filter_number), jnp.float32),
        "fc_b": 0.1 * jax.random.normal(ks[3], (output_dim,), jnp.float32),
    }
    for i, K in enumerate(filter_sizes):
        params[f"conv_w_{i}"] = 0.1 * jax.random.normal(
            ks[4 + i], (filter_number, embedding_dim, K), jnp.float32)
        params[f"conv_b_{i}"] = 0.1 * jax.random.normal(
            ks[7 + i], (filter_number,), jnp.float32)

    text = jax.random.randint(jax.random.PRNGKey(42), (B, L), 0, vocab_size,
                              dtype=jnp.int32)

    # Tolerance is set for bf16 matmul operands (f32 accumulation) vs f32 ref.
    for mode in ("multi", "static"):
        out = polar_cnn_forward(text, params, filter_sizes=filter_sizes, mode=mode)
        out = jax.block_until_ready(out)
        ref = polar_cnn_reference(text, params, filter_sizes=filter_sizes, mode=mode)
        assert out.shape == (B, output_dim)
        assert jnp.allclose(out, ref, atol=1e-2, rtol=1e-2), (mode, out, ref)

    print("KERNEL_OK")
</pallas_src>

<mosaic_0001>
module attributes {stable_mosaic.version = 11 : i64} {
  func.func @_polar_cnn_kernel(%arg0: i32, %arg1: memref<2x2x16x32xbf16, #tpu.memory_space<vmem>>, %arg2: memref<160x96xbf16, #tpu.memory_space<vmem>>, %arg3: memref<1x96xf32, #tpu.memory_space<vmem>>, %arg4: memref<96x128xf32, #tpu.memory_space<vmem>>, %arg5: memref<1x128xf32, #tpu.memory_space<vmem>>, %arg6: memref<2x128xf32, #tpu.memory_space<vmem>>) attributes {dimension_semantics = [#tpu.dimension_semantics<parallel>], iteration_bounds = array<i64: 1>, scalar_prefetch = 0 : i64, scratch_operands = 0 : i64, tpu.core_type = #tpu.core_type<tc>, window_params = [{transform_indices = @transform_0, window_bounds = array<i64: 2, 2, 16, 32>}, {pipeline_mode = #tpu.pipeline_mode<synchronous>, transform_indices = @transform_1, window_bounds = array<i64: 160, 96>}, {pipeline_mode = #tpu.pipeline_mode<synchronous>, transform_indices = @transform_2, window_bounds = array<i64: 1, 96>}, {pipeline_mode = #tpu.pipeline_mode<synchronous>, transform_indices = @transform_3, window_bounds = array<i64: 96, 128>}, {pipeline_mode = #tpu.pipeline_mode<synchronous>, transform_indices = @transform_4, window_bounds = array<i64: 1, 128>}, {transform_indices = @transform_5, window_bounds = array<i64: 2, 128>}]} {
    %c0 = arith.constant 0 : index
    %c0_0 = arith.constant 0 : index
    %c0_1 = arith.constant 0 : index
    %c0_2 = arith.constant 0 : index
    %0 = vector.load %arg1[%c0, %c0_0, %c0_1, %c0_2] : memref<2x2x16x32xbf16, #tpu.memory_space<vmem>>, vector<2x2x16x32xbf16>
    %1 = vector.shape_cast %0 : vector<2x2x16x32xbf16> to vector<64x32xbf16>
    %2 = arith.extf %1 : vector<64x32xbf16> to vector<64x32xf32>
    %c63_i32 = arith.constant 63 : i32
    %3 = tpu.dynamic_rotate %2 by %c63_i32 dim 0 : vector<64x32xf32>, i32 -> vector<64x32xf32>
    %c62_i32 = arith.constant 62 : i32
    %4 = tpu.dynamic_rotate %2 by %c62_i32 dim 0 : vector<64x32xf32>, i32 -> vector<64x32xf32>
    %c61_i32 = arith.constant 61 : i32
    %5 = tpu.dynamic_rotate %2 by %c61_i32 dim 0 : vector<64x32xf32>, i32 -> vector<64x32xf32>
    %c60_i32 = arith.constant 60 : i32
    %6 = tpu.dynamic_rotate %2 by %c60_i32 dim 0 : vector<64x32xf32>, i32 -> vector<64x32xf32>
    %7 = tpu.concatenate %2, %3, %4, %5, %6 in 1 : vector<64x32xf32>, vector<64x32xf32>, vector<64x32xf32>, vector<64x32xf32>, vector<64x32xf32> -> vector<64x160xf32>
    %8 = arith.truncf %7 : vector<64x160xf32> to vector<64x160xbf16>
    %c0_3 = arith.constant 0 : index
    %c0_4 = arith.constant 0 : index
    %9 = vector.load %arg2[%c0_3, %c0_4] : memref<160x96xbf16, #tpu.memory_space<vmem>>, vector<160x96xbf16>
    %cst = arith.constant dense<0.000000e+00> : vector<64x96xf32>
    %10 = tpu.matmul %8, %9, %cst {dimension_numbers = #tpu.dot_dimension_numbers<[1], [0], [0], [1], [0, 0, 1, 1], [], []>} : vector<64x160xbf16>, vector<160x96xbf16>, vector<64x96xf32> -> vector<64x96xf32>
    %c0_5 = arith.constant 0 : index
    %c0_6 = arith.constant 0 : index
    %11 = vector.load %arg3[%c0_5, %c0_6] : memref<1x96xf32, #tpu.memory_space<vmem>>, vector<1x96xf32>
    %12 = vector.broadcast %11 : vector<1x96xf32> to vector<64x96xf32>
    %13 = arith.addf %10, %12 : vector<64x96xf32>
    %cst_7 = arith.constant 0.000000e+00 : f32
    %14 = vector.broadcast %cst_7 : f32 to vector<64x96xf32>
    %15 = arith.maximumf %13, %14 : vector<64x96xf32>
    %16 = tpu.iota {dimensions = array<i32: 0>} : vector<16x96xi32>
    %17 = tpu.iota {dimensions = array<i32: 1>} : vector<16x96xi32>
    %c0_i32 = arith.constant 0 : i32
    %18 = vector.broadcast %c0_i32 : i32 to vector<16x96xi32>
    %c0_i32_8 = arith.constant 0 : i32
    %19 = vector.broadcast %c0_i32_8 : i32 to vector<16x96xi32>
    %20 = arith.cmpi sge, %17, %19 : vector<16x96xi32>
    %c32_i32 = arith.constant 32 : i32
    %21 = vector.broadcast %c32_i32 : i32 to vector<16x96xi32>
    %22 = arith.cmpi slt, %17, %21 : vector<16x96xi32>
    %23 = arith.andi %20, %22 : vector<16x96xi1>
    %c14_i32 = arith.constant 14 : i32
    %24 = vector.broadcast %c14_i32 : i32 to vector<16x96xi32>
    %25 = arith.select %23, %24, %18 : vector<16x96xi1>, vector<16x96xi32>
    %c32_i32_9 = arith.constant 32 : i32
    %26 = vector.broadcast %c32_i32_9 : i32 to vector<16x96xi32>
    %27 = arith.cmpi sge, %17, %26 : vector<16x96xi32>
    %c64_i32 = arith.constant 64 : i32
    %28 = vector.broadcast %c64_i32 : i32 to vector<16x96xi32>
    %29 = arith.cmpi slt, %17, %28 : vector<16x96xi32>
    %30 = arith.andi %27, %29 : vector<16x96xi1>
    %c13_i32 = arith.constant 13 : i32
    %31 = vector.broadcast %c13_i32 : i32 to vector<16x96xi32>
    %32 = arith.select %30, %31, %25 : vector<16x96xi1>, vector<16x96xi32>
    %c64_i32_10 = arith.constant 64 : i32
    %33 = vector.broadcast %c64_i32_10 : i32 to vector<16x96xi32>
    %34 = arith.cmpi sge, %17, %33 : vector<16x96xi32>
    %c96_i32 = arith.constant 96 : i32
    %35 = vector.broadcast %c96_i32 : i32 to vector<16x96xi32>
    %36 = arith.cmpi slt, %17, %35 : vector<16x96xi32>
    %37 = arith.andi %34, %36 : vector<16x96xi1>
    %c12_i32 = arith.constant 12 : i32
    %38 = vector.broadcast %c12_i32 : i32 to vector<16x96xi32>
    %39 = arith.select %37, %38, %32 : vector<16x96xi1>, vector<16x96xi32>
    %40 = arith.cmpi slt, %16, %39 : vector<16x96xi32>
    %41 = vector.shape_cast %15 : vector<64x96xf32> to vector<4x16x96xf32>
    %42 = vector.shape_cast %40 : vector<16x96xi1> to vector<1x16x96xi1>
    %cst_11 = arith.constant 0.000000e+00 : f32
    %43 = vector.shape_cast %42 : vector<1x16x96xi1> to vector<1x16x96xi1>
    %44 = vector.broadcast %43 : vector<1x16x96xi1> to vector<4x16x96xi1>
    %45 = vector.broadcast %cst_11 : f32 to vector<4x16x96xf32>
    %46 = arith.select %44, %41, %45 : vector<4x16x96xi1>, vector<4x16x96xf32>
    %47 = vector.extract_strided_slice %46 {offsets = [0, 0, 0], sizes = [2, 16, 96], strides = [1, 1, 1]} : vector<4x16x96xf32> to vector<2x16x96xf32>
    %48 = vector.extract_strided_slice %46 {offsets = [2, 0, 0], sizes = [2, 16, 96], strides = [1, 1, 1]} : vector<4x16x96xf32> to vector<2x16x96xf32>
    %49 = arith.addf %47, %48 : vector<2x16x96xf32>
    %cst_12 = arith.constant dense<0xFF800000> : vector<2x96xf32>
    %50 = vector.multi_reduction <maximumf>, %49, %cst_12 [1] : vector<2x16x96xf32> to vector<2x96xf32>
    %c0_13 = arith.constant 0 : index
    %c0_14 = arith.constant 0 : index
    %51 = vector.load %arg4[%c0_13, %c0_14] : memref<96x128xf32, #tpu.memory_space<vmem>>, vector<96x128xf32>
    %cst_15 = arith.constant dense<0.000000e+00> : vector<2x128xf32>
    %52 = tpu.matmul %50, %51, %cst_15 {dimension_numbers = #tpu.dot_dimension_numbers<[1], [0], [0], [1], [0, 0, 1, 1], [], []>} : vector<2x96xf32>, vector<96x128xf32>, vector<2x128xf32> -> vector<2x128xf32>
    %c0_16 = arith.constant 0 : index
    %c0_17 = arith.constant 0 : index
    %53 = vector.load %arg5[%c0_16, %c0_17] : memref<1x128xf32, #tpu.memory_space<vmem>>, vector<1x128xf32>
    %54 = vector.broadcast %53 : vector<1x128xf32> to vector<2x128xf32>
    %55 = arith.addf %52, %54 : vector<2x128xf32>
    %c0_18 = arith.constant 0 : index
    %c0_19 = arith.constant 0 : index
    %56 = vector.load %arg6[%c0_18, %c0_19] : memref<2x128xf32, #tpu.memory_space<vmem>>, vector<2x128xf32>
    tpu.vector_store %arg6[%c0_18, %c0_19], %55 {strides = array<i32>} : memref<2x128xf32, #tpu.memory_space<vmem>>, vector<2x128xf32>,
    return
  }
  func.func @transform_0(%arg0: i32) -> (i32, i32, i32, i32) {
    %c0_i32 = arith.constant 0 : i32
    %c0_i32_0 = arith.constant 0 : i32
    %c0_i32_1 = arith.constant 0 : i32
    %c0_i32_2 = arith.constant 0 : i32
    return %c0_i32, %arg0, %c0_i32_0, %c0_i32_1 : i32, i32, i32, i32
  }
  func.func @transform_1(%arg0: i32) -> (i32, i32) {
    %c0_i32 = arith.constant 0 : i32
    %c0_i32_0 = arith.constant 0 : i32
    %c0_i32_1 = arith.constant 0 : i32
    return %c0_i32, %c0_i32_0 : i32, i32
  }
  func.func @transform_2(%arg0: i32) -> (i32, i32) {
    %c0_i32 = arith.constant 0 : i32
    %c0_i32_0 = arith.constant 0 : i32
    %c0_i32_1 = arith.constant 0 : i32
    return %c0_i32, %c0_i32_0 : i32, i32
  }
  func.func @transform_3(%arg0: i32) -> (i32, i32) {
    %c0_i32 = arith.constant 0 : i32
    %c0_i32_0 = arith.constant 0 : i32
    %c0_i32_1 = arith.constant 0 : i32
    return %c0_i32, %c0_i32_0 : i32, i32
  }
  func.func @transform_4(%arg0: i32) -> (i32, i32) {
    %c0_i32 = arith.constant 0 : i32
    %c0_i32_0 = arith.constant 0 : i32
    %c0_i32_1 = arith.constant 0 : i32
    return %c0_i32, %c0_i32_0 : i32, i32
  }
  func.func @transform_5(%arg0: i32) -> (i32, i32) {
    %c0_i32 = arith.constant 0 : i32
    %c0_i32_0 = arith.constant 0 : i32
    return %arg0, %c0_i32 : i32, i32
  }
}

</mosaic_0001>

<llo_original>
// kernel: tpu_custom_call.1
$region0: #{tpu_custom_call.1}
  #allocation0 [shape = 'u32[]', space=smem, size = 0x4, offset = 0x4, fixed_abs, tag = 'smem constant byte address 0x4 - core index']
  #allocation1 [shape = 'u32[144,128]{1,0:T(1,128)}', space=vmem, size = 0x12000, scoped, tag = 'internal scratch']
  %s0 = inlined_call_operand.hbm [shape: bf16[2,2,16,32], index: 0, kind: input, shape index: {}]
  %s1 = inlined_call_operand.hbm [shape: bf16[160,96], index: 1, kind: input, shape index: {}]
  %s2 = inlined_call_operand.vmem [shape: f32[1,96], index: 2, kind: input, shape index: {}]
  %s3 = inlined_call_operand.hbm [shape: f32[96,128], index: 3, kind: input, shape index: {}]
  %s4 = inlined_call_operand.vmem [shape: f32[1,128], index: 4, kind: input, shape index: {}]
  %s5 = inlined_call_operand.hbm [shape: f32[2,128], index: 5, kind: output, shape index: {}]
  %s6 = sld [smem:[#allocation0]]
  $region42: #{tpu_custom_call.1} parent=0
    _
  %s8 = ssub.s32 1, %s6
  %s9 = scalar_select 0, %s8, %s6
  $region1: #{tpu_custom_call.1} parent=0
    #allocation2 [shape = 'u8[16384]{0}', space=vmem, size = 0x4000, scoped, tag = 'input window, operand 0, single buffered']
    #allocation3 [shape = 's32[1]{0}', space=sflag, size = 0x4, scoped, tag = 'scoped memory for tpu_custom_call.1']
    #allocation4 [shape = 's32[1]{0}', space=sflag, size = 0x4, scoped, tag = 'scoped memory for tpu_custom_call.1']
    #allocation5 [shape = 'u8[40960]{0}', space=vmem, size = 0xa000, scoped, tag = 'input window, operand 1, single buffered']
    #allocation6 [shape = 's32[1]{0}', space=sflag, size = 0x4, scoped, tag = 'scoped memory for tpu_custom_call.1']
    #allocation7 [shape = 'u8[49152]{0}', space=vmem, size = 0xc000, scoped, tag = 'input window, operand 3, single buffered']
    #allocation8 [shape = 'u8[1024]{0}', space=vmem, size = 0x400, scoped, tag = 'output window, operand 0, single buffered']
    %10 = vsyncpa [#allocation3], 0
    %11 = vsyncpa [#allocation6], 0
    %12 = vsyncpa [#allocation4], 0
    // Predicated region
    $region2: #{tpu_custom_call.1} parent=1 // pred_check
      _
    $region3: #{tpu_custom_call.1} parent=1 // pred_check_branch
      %14 = sbr.rel (0) target = $region5
    $region4: #{tpu_custom_call.1} parent=1 // pred_region
      %s16 = ssub.s32 512, 512
      %17 = vsyncadd [#allocation3], %s16
      %s18 = sshll.u32 [#allocation2], 4
      %s19 = int_to_ptr.vmem [resolvable:$true] %s18
      %24 = dma.hbm_to_vmem [thread:$0]  %s0, 512, %s19, [#allocation3], 64, 64, 4
    $region5: #{tpu_custom_call.1} parent=1 // pred_fallthru
      _
    // Predicated region
    $region6: #{tpu_custom_call.1} parent=1 // pred_check
      _
    $region7: #{tpu_custom_call.1} parent=1 // pred_check_branch
      %26 = sbr.rel (0) target = $region9
    $region8: #{tpu_custom_call.1} parent=1 // pred_region
      %s28 = ssub.s32 1280, 1280
      %29 = vsyncadd [#allocation6], %s28
      %s30 = sshll.u32 [#allocation5], 4
      %s31 = int_to_ptr.vmem [resolvable:$true] %s30
      %36 = dma.hbm_to_vmem [thread:$0]  %s1, 1280, %s31, [#allocation6], 64, 64, 4
    $region9: #{tpu_custom_call.1} parent=1 // pred_fallthru
      _
    // Predicated region
    $region10: #{tpu_custom_call.1} parent=1 // pred_check
      _
    $region11: #{tpu_custom_call.1} parent=1 // pred_check_branch
      %38 = sbr.rel (0) target = $region13
    $region12: #{tpu_custom_call.1} parent=1 // pred_region
      _
    $region13: #{tpu_custom_call.1} parent=1 // pred_fallthru
      _
    // Predicated region
    $region14: #{tpu_custom_call.1} parent=1 // pred_check
      _
    $region15: #{tpu_custom_call.1} parent=1 // pred_check_branch
      %40 = sbr.rel (0) target = $region17
    $region16: #{tpu_custom_call.1} parent=1 // pred_region
      %s42 = ssub.s32 1536, 1536
      %43 = vsyncadd [#allocation6], %s42
      %s44 = sshll.u32 [#allocation7], 4
      %s45 = int_to_ptr.vmem [resolvable:$true] %s44
      %50 = dma.hbm_to_vmem [thread:$0]  %s3, 1536, %s45, [#allocation6], 128, 128, 8
    $region17: #{tpu_custom_call.1} parent=1 // pred_fallthru
      _
    // Predicated region
    $region18: #{tpu_custom_call.1} parent=1 // pred_check
      _
    $region19: #{tpu_custom_call.1} parent=1 // pred_check_branch
      %52 = sbr.rel (0) target = $region21
    $region20: #{tpu_custom_call.1} parent=1 // pred_region
      _
    $region21: #{tpu_custom_call.1} parent=1 // pred_fallthru
      _
    // Predicated region
    $region22: #{tpu_custom_call.1} parent=1 // pred_check
      _
    $region23: #{tpu_custom_call.1} parent=1 // pred_check_branch
      %54 = sbr.rel (0) target = $region25
    $region24: #{tpu_custom_call.1} parent=1 // pred_region
      %55 = dma.done [#allocation3], 512
    $region25: #{tpu_custom_call.1} parent=1 // pred_fallthru
      _
    // Predicated region
    $region26: #{tpu_custom_call.1} parent=1 // pred_check
      _
    $region27: #{tpu_custom_call.1} parent=1 // pred_check_branch
      %57 = sbr.rel (0) target = $region29
    $region28: #{tpu_custom_call.1} parent=1 // pred_region
      %58 = dma.done [#allocation6], 1280
    $region29: #{tpu_custom_call.1} parent=1 // pred_fallthru
      _
    // Predicated region
    $region30: #{tpu_custom_call.1} parent=1 // pred_check
      _
    $region31: #{tpu_custom_call.1} parent=1 // pred_check_branch
      %60 = sbr.rel (0) target = $region33
    $region32: #{tpu_custom_call.1} parent=1 // pred_region
      %61 = dma.done [#allocation6], 1536
    $region33: #{tpu_custom_call.1} parent=1 // pred_fallthru
      _
    %v63 = vld [vmem:[#allocation2] sm:$0xf]
    %v64 = vld [vmem:[#allocation2 + $0x4] sm:$0xf]
    %v65 = vld [vmem:[#allocation2 + $0x8] sm:$0xf]
    %v66 = vld [vmem:[#allocation2 + $0xc] sm:$0xf]
    %v67 = vld [vmem:[#allocation2 + $0x10] sm:$0xf]
    %v68 = vld [vmem:[#allocation2 + $0x14] sm:$0xf]
    %v69 = vld [vmem:[#allocation2 + $0x18] sm:$0xf]
    %v70 = vld [vmem:[#allocation2 + $0x1c] sm:$0xf]
    %v71 = vunpack.c.l.bf16 %v63
    %v72 = vunpack.c.l.bf16 %v64
    %v73 = vunpack.c.l.bf16 %v65
    %v74 = vunpack.c.l.bf16 %v66
    %v75 = vunpack.c.l.bf16 %v67
    %v76 = vunpack.c.l.bf16 %v68
    %v77 = vunpack.c.l.bf16 %v69
    %v78 = vunpack.c.l.bf16 %v70
    %v79 = vrot.slane %v71, 1
    %v80 = vrot.slane %v72, 1
    %v81 = vrot.slane %v73, 1
    %v82 = vrot.slane %v74, 1
    %v83 = vrot.slane %v75, 1
    %v84 = vrot.slane %v76, 1
    %v85 = vrot.slane %v77, 1
    %v86 = vrot.slane %v78, 1
    %v87 = vlaneseq
    %v88 = vshrl.u32 %v87, 7
    %vm89 = vcmp.lt.s32.totalorder %v88, 7
    %v90 = vsel %vm89, %v85, %v86
    %v91 = vsel %vm89, %v84, %v85
    %v92 = vsel %vm89, %v83, %v84
    %v93 = vsel %vm89, %v82, %v83
    %v94 = vsel %vm89, %v81, %v82
    %v95 = vsel %vm89, %v80, %v81
    %v96 = vsel %vm89, %v79, %v80
    %v97 = vsel %vm89, %v86, %v79
    %v98 = vrot.slane %v71, 2
    %v99 = vrot.slane %v72, 2
    %v100 = vrot.slane %v73, 2
    %v101 = vrot.slane %v74, 2
    %v102 = vrot.slane %v75, 2
    %v103 = vrot.slane %v76, 2
    %v104 = vrot.slane %v77, 2
    %v105 = vrot.slane %v78, 2
    %vm106 = vcmp.lt.s32.totalorder %v88, 6
    %v107 = vsel %vm106, %v104, %v105
    %v108 = vsel %vm106, %v103, %v104
    %v109 = vsel %vm106, %v102, %v103
    %v110 = vsel %vm106, %v101, %v102
    %v111 = vsel %vm106, %v100, %v101
    %v112 = vsel %vm106, %v99, %v100
    %v113 = vsel %vm106, %v98, %v99
    %v114 = vsel %vm106, %v105, %v98
    %v115 = vrot.slane %v71, 3
    %v116 = vrot.slane %v72, 3
    %v117 = vrot.slane %v73, 3
    %v118 = vrot.slane %v74, 3
    %v119 = vrot.slane %v75, 3
    %v120 = vrot.slane %v76, 3
    %v121 = vrot.slane %v77, 3
    %v122 = vrot.slane %v78, 3
    %vm123 = vcmp.lt.s32.totalorder %v88, 5
    %v124 = vsel %vm123, %v121, %v122
    %v125 = vsel %vm123, %v120, %v121
    %v126 = vsel %vm123, %v119, %v120
    %v127 = vsel %vm123, %v118, %v119
    %v128 = vsel %vm123, %v117, %v118
    %v129 = vsel %vm123, %v116, %v117
    %v130 = vsel %vm123, %v115, %v116
    %v131 = vsel %vm123, %v122, %v115
    %v132 = vrot.slane %v71, 4
    %v133 = vrot.slane %v72, 4
    %v134 = vrot.slane %v73, 4
    %v135 = vrot.slane %v74, 4
    %v136 = vrot.slane %v75, 4
    %v137 = vrot.slane %v76, 4
    %v138 = vrot.slane %v77, 4
    %v139 = vrot.slane %v78, 4
    %vm140 = vcmp.lt.s32.totalorder %v88, 4
    %v141 = vsel %vm140, %v138, %v139
    %v142 = vsel %vm140, %v137, %v138
    %v143 = vsel %vm140, %v136, %v137
    %v144 = vsel %vm140, %v135, %v136
    %v145 = vsel %vm140, %v134, %v135
    %v146 = vsel %vm140, %v133, %v134
    %v147 = vsel %vm140, %v132, %v133
    %v148 = vsel %vm140, %v139, %v132
    %157 = vrot.lane.b32.xlu0 %v96, 32
    %v158 = vpop.permute.xlu0 %157
    %159 = vrot.lane.b32.xlu0 %v95, 32
    %v160 = vpop.permute.xlu0 %159
    %161 = vrot.lane.b32.xlu0 %v94, 32
    %v162 = vpop.permute.xlu0 %161
    %163 = vrot.lane.b32.xlu0 %v93, 32
    %v164 = vpop.permute.xlu0 %163
    %165 = vrot.lane.b32.xlu0 %v92, 32
    %v166 = vpop.permute.xlu0 %165
    %167 = vrot.lane.b32.xlu0 %v91, 32
    %v168 = vpop.permute.xlu0 %167
    %169 = vrot.lane.b32.xlu0 %v90, 32
    %v170 = vpop.permute.xlu0 %169
    %171 = vrot.lane.b32.xlu0 %v97, 32
    %v172 = vpop.permute.xlu0 %171
    %189 = vrot.lane.b32.xlu0 %v113, 64
    %v190 = vpop.permute.xlu0 %189
    %191 = vrot.lane.b32.xlu0 %v112, 64
    %v192 = vpop.permute.xlu0 %191
    %193 = vrot.lane.b32.xlu0 %v111, 64
    %v194 = vpop.permute.xlu0 %193
    %195 = vrot.lane.b32.xlu0 %v110, 64
    %v196 = vpop.permute.xlu0 %195
    %197 = vrot.lane.b32.xlu0 %v109, 64
    %v198 = vpop.permute.xlu0 %197
    %199 = vrot.lane.b32.xlu0 %v108, 64
    %v200 = vpop.permute.xlu0 %199
    %201 = vrot.lane.b32.xlu0 %v107, 64
    %v202 = vpop.permute.xlu0 %201
    %203 = vrot.lane.b32.xlu0 %v114, 64
    %v204 = vpop.permute.xlu0 %203
    %221 = vrot.lane.b32.xlu0 %v130, 96
    %v222 = vpop.permute.xlu0 %221
    %223 = vrot.lane.b32.xlu0 %v129, 96
    %v224 = vpop.permute.xlu0 %223
    %225 = vrot.lane.b32.xlu0 %v128, 96
    %v226 = vpop.permute.xlu0 %225
    %227 = vrot.lane.b32.xlu0 %v127, 96
    %v228 = vpop.permute.xlu0 %227
    %229 = vrot.lane.b32.xlu0 %v126, 96
    %v230 = vpop.permute.xlu0 %229
    %231 = vrot.lane.b32.xlu0 %v125, 96
    %v232 = vpop.permute.xlu0 %231
    %233 = vrot.lane.b32.xlu0 %v124, 96
    %v234 = vpop.permute.xlu0 %233
    %235 = vrot.lane.b32.xlu0 %v131, 96
    %v236 = vpop.permute.xlu0 %235
    %vm245 = vcmask 261120
    %v246 = vsel %vm245, %v71, %v158
    %v247 = vsel %vm245, %v72, %v160
    %v248 = vsel %vm245, %v73, %v162
    %v249 = vsel %vm245, %v74, %v164
    %v250 = vsel %vm245, %v75, %v166
    %v251 = vsel %vm245, %v76, %v168
    %v252 = vsel %vm245, %v77, %v170
    %v253 = vsel %vm245, %v78, %v172
    %vm254 = vcmask 523264
    %v255 = vsel %vm254, %v246, %v190
    %v256 = vsel %vm254, %v247, %v192
    %v257 = vsel %vm254, %v248, %v194
    %v258 = vsel %vm254, %v249, %v196
    %v259 = vsel %vm254, %v250, %v198
    %v260 = vsel %vm254, %v251, %v200
    %v261 = vsel %vm254, %v252, %v202
    %v262 = vsel %vm254, %v253, %v204
    %vm263 = vcmask 785408
    %v264 = vsel %vm263, %v255, %v222
    %v265 = vsel %vm263, %v256, %v224
    %v266 = vsel %vm263, %v257, %v226
    %v267 = vsel %vm263, %v258, %v228
    %v268 = vsel %vm263, %v259, %v230
    %v269 = vsel %vm263, %v260, %v232
    %v270 = vsel %vm263, %v261, %v234
    %v271 = vsel %vm263, %v262, %v236
    %v272 = vpack.c.bf16 %v265, %v264
    %v273 = vpack.c.bf16 %v146, %v147
    %v274 = vpack.c.bf16 %v267, %v266
    %v275 = vpack.c.bf16 %v144, %v145
    %v276 = vpack.c.bf16 %v269, %v268
    %v277 = vpack.c.bf16 %v142, %v143
    %v278 = vpack.c.bf16 %v271, %v270
    %v279 = vpack.c.bf16 %v148, %v141
    %v280 = vld [vmem:[#allocation5] sm:$0xf]
    %v281 = vld [vmem:[#allocation5 + $0x4] sm:$0xf]
    %v282 = vld [vmem:[#allocation5 + $0x8] sm:$0xf]
    %v283 = vld [vmem:[#allocation5 + $0xc] sm:$0xf]
    %v284 = vld [vmem:[#allocation5 + $0x10] sm:$0xf]
    %v285 = vld [vmem:[#allocation5 + $0x14] sm:$0xf]
    %v286 = vld [vmem:[#allocation5 + $0x18] sm:$0xf]
    %v287 = vld [vmem:[#allocation5 + $0x1c] sm:$0xf]
    %v288 = vld [vmem:[#allocation5 + $0x20] sm:$0xf]
    %v289 = vld [vmem:[#allocation5 + $0x24] sm:$0xf]
    %v290 = vld [vmem:[#allocation5 + $0x28] sm:$0xf]
    %v291 = vld [vmem:[#allocation5 + $0x2c] sm:$0xf]
    %v292 = vld [vmem:[#allocation5 + $0x30] sm:$0xf]
    %v293 = vld [vmem:[#allocation5 + $0x34] sm:$0xf]
    %v294 = vld [vmem:[#allocation5 + $0x38] sm:$0xf]
    %v295 = vld [vmem:[#allocation5 + $0x3c] sm:$0xf]
    %v296 = vld [vmem:[#allocation5 + $0x40] sm:$0xf]
    %v297 = vld [vmem:[#allocation5 + $0x44] sm:$0xf]
    %v298 = vld [vmem:[#allocation5 + $0x48] sm:$0xf]
    %v299 = vld [vmem:[#allocation5 + $0x4c] sm:$0xf]
    %v300 = vld [vmem:[%s2] sm:$0x1]
    %v302 = vlaneseq
    %v303 = vshrl.u32 %v302, 7
    %v304 = vsub.s32 0, %v303
    %v305 = vrot.slane %v300, %v304
    %v327 = vunpack.c.l.b16 %v280
    %v328 = vunpack.c.l.b16 %v281
    %v329 = vunpack.c.l.b16 %v282
    %v330 = vunpack.c.l.b16 %v283
    %v331 = vunpack.c.l.b16 %v284
    %v332 = vunpack.c.l.b16 %v285
    %v333 = vunpack.c.l.b16 %v286
    %v334 = vunpack.c.l.b16 %v287
    %v335 = vunpack.c.l.b16 %v288
    %v336 = vunpack.c.l.b16 %v289
    %v337 = vunpack.c.l.b16 %v290
    %v338 = vunpack.c.l.b16 %v291
    %v339 = vunpack.c.l.b16 %v292
    %v340 = vunpack.c.l.b16 %v293
    %v341 = vunpack.c.l.b16 %v294
    %v342 = vunpack.c.l.b16 %v295
    %v343 = vunpack.c.l.b16 %v296
    %v344 = vunpack.c.l.b16 %v297
    %v345 = vunpack.c.l.b16 %v298
    %v346 = vunpack.c.l.b16 %v299
    %v347 = vpack.c.b16 %v328, %v327
    %v348 = vpack.c.b16 %v330, %v329
    %v349 = vpack.c.b16 %v332, %v331
    %v350 = vpack.c.b16 %v334, %v333
    %v351 = vpack.c.b16 %v336, %v335
    %v352 = vpack.c.b16 %v338, %v337
    %v353 = vpack.c.b16 %v340, %v339
    %v354 = vpack.c.b16 %v342, %v341
    %v355 = vpack.c.b16 %v344, %v343
    %v356 = vpack.c.b16 %v346, %v345
    %v368 = vsel %vm245, %v273, 0
    %v371 = vsel %vm245, %v275, 0
    %v374 = vsel %vm245, %v277, 0
    %v377 = vsel %vm245, %v279, 0
    %379 = vmatprep.subr.bf16.mxu0 0
    %380 = vmatpush1.bf16.msra.mxu0 %v347
    %381 = vmatprep.subr.bf16.mxu0 0
    %382 = vmatpush1.bf16.msra.mxu0 %v348
    %383 = vmatprep.subr.bf16.mxu0 0
    %384 = vmatpush1.bf16.msra.mxu0 %v349
    %385 = vmatprep.subr.bf16.mxu0 0
    %386 = vmatpush1.bf16.msra.mxu0 %v350
    %387 = vmatprep.subr.bf16.mxu0 0
    %388 = vmatpush1.bf16.msra.mxu0 %v351
    %389 = vmatprep.subr.bf16.mxu0 0
    %390 = vmatpush1.bf16.msra.mxu0 %v352
    %391 = vmatprep.subr.bf16.mxu0 0
    %392 = vmatpush1.bf16.msra.mxu0 %v353
    %393 = vmatprep.subr.bf16.mxu0 0
    %394 = vmatpush1.bf16.msra.mxu0 %v354
    %395 = vmatprep.subr.bf16.mxu0 0
    %396 = vmatpush1.bf16.msra.mxu0 %v355
    %397 = vmatprep.subr.bf16.mxu0 0
    %398 = vmatpush1.bf16.msra.mxu0 %v356
    %399 = vmatprep.subr.bf16.mxu0 0
    %400 = vmatpush1.bf16.msra.mxu0 0
    %401 = vmatprep.subr.bf16.mxu0 0
    %402 = vmatpush1.bf16.msra.mxu0 0
    %403 = vmatprep.subr.bf16.mxu0 0
    %404 = vmatpush1.bf16.msra.mxu0 0
    %405 = vmatprep.subr.bf16.mxu0 0
    %406 = vmatpush1.bf16.msra.mxu0 0
    %407 = vmatprep.subr.bf16.mxu0 0
    %408 = vmatpush1.bf16.msra.mxu0 0
    %409 = vmatprep.subr.bf16.mxu0 0
    %410 = vmatpush1.bf16.msra.mxu0 0
    %411 = vmatprep.mubr.bf16.mxu0 %v368
    %412 = vmatmul.mubr.bf16.gmra.mrb[0].mxu0 %v272
    %v413 = vpop.f32.mrb[0].mxu0
    %v414 = vadd.f32 %v305, %v413
    %v415 = vpop.f32.mrb[0].mxu0
    %v416 = vpop.f32.mrb[0].mxu0
    %v417 = vadd.f32 %v305, %v416
    %v418 = vpop.f32.mrb[0].mxu0
    %419 = vmatprep.mubr.bf16.mxu0 %v371
    %420 = vmatmul.mubr.bf16.gmra.mrb[0].mxu0 %v274
    %v421 = vpop.f32.mrb[0].mxu0
    %v422 = vadd.f32 %v305, %v421
    %v423 = vpop.f32.mrb[0].mxu0
    %v424 = vpop.f32.mrb[0].mxu0
    %v425 = vadd.f32 %v305, %v424
    %v426 = vpop.f32.mrb[0].mxu0
    %427 = vmatprep.mubr.bf16.mxu0 %v374
    %428 = vmatmul.mubr.bf16.gmra.mrb[0].mxu0 %v276
    %v429 = vpop.f32.mrb[0].mxu0
    %v430 = vadd.f32 %v305, %v429
    %v431 = vpop.f32.mrb[0].mxu0
    %v432 = vpop.f32.mrb[0].mxu0
    %v433 = vadd.f32 %v305, %v432
    %v434 = vpop.f32.mrb[0].mxu0
    %435 = vmatprep.mubr.bf16.mxu0 %v377
    %436 = vmatmul.mubr.bf16.gmra.mrb[0].mxu0 %v278
    %v437 = vpop.f32.mrb[0].mxu0
    %v438 = vadd.f32 %v305, %v437
    %v439 = vpop.f32.mrb[0].mxu0
    %v440 = vpop.f32.mrb[0].mxu0
    %v441 = vadd.f32 %v305, %v440
    %v442 = vpop.f32.mrb[0].mxu0
    %443 = vdwg.mxu0
    %v444 = vmax.f32 %v414, 0.0
    %v445 = vmax.f32 %v417, 0.0
    %v446 = vmax.f32 %v422, 0.0
    %v447 = vmax.f32 %v425, 0.0
    %v448 = vmax.f32 %v430, 0.0
    %v449 = vmax.f32 %v433, 0.0
    %v450 = vmax.f32 %v438, 0.0
    %v451 = vmax.f32 %v441, 0.0
    %v452 = vadd.s32 %v88, 8
    %v453 = vlaneseq
    %v454 = vand.u32 %v453, 127
    %vm455 = vcmp.ge.s32.totalorder %v454, 0
    %vm456 = vcmp.lt.s32.totalorder %v454, 32
    %vm457 = vmand %vm455, %vm456
    %v458 = vsel %vm457, 14, 0
    %vm459 = vcmp.ge.s32.totalorder %v454, 32
    %vm460 = vcmp.lt.s32.totalorder %v454, 64
    %vm461 = vmand %vm459, %vm460
    %v462 = vsel %vm461, 13, %v458
    %vm463 = vcmp.ge.s32.totalorder %v454, 64
    %vm464 = vcmp.lt.s32.totalorder %v454, 96
    %vm465 = vmand %vm463, %vm464
    %v466 = vsel %vm465, 12, %v462
    %vm467 = vcmp.lt.s32.totalorder %v88, %v466
    %vm468 = vcmp.lt.s32.totalorder %v452, %v466
    %v469 = vsel %vm467, 1, 0
    %v470 = vsel %vm468, 1, 0
    %vm471 = vcmp.eq.s32.totalorder %v469, 1
    %vm472 = vcmp.eq.s32.totalorder %v470, 1
    %v473 = vsel %vm471, %v444, 0.0
    %v474 = vsel %vm472, %v445, 0.0
    %v475 = vsel %vm471, %v446, 0.0
    %v476 = vsel %vm472, %v447, 0.0
    %v477 = vsel %vm471, %v448, 0.0
    %v478 = vsel %vm472, %v449, 0.0
    %v479 = vsel %vm471, %v450, 0.0
    %v480 = vsel %vm472, %v451, 0.0
    %v481 = vadd.f32 %v473, %v477
    %v482 = vadd.f32 %v474, %v478
    %v483 = vadd.f32 %v475, %v479
    %v484 = vadd.f32 %v476, %v480
    %v485 = vsel %vm263, %v481, -inf
    %v486 = vsel %vm263, %v482, -inf
    %v487 = vmax.f32 %v485, %v486
    %v488 = vrot.slane %v487, 4
    %v489 = vmax.f32 %v487, %v488
    %v490 = vrot.slane %v489, 2
    %v491 = vmax.f32 %v489, %v490
    %v492 = vrot.slane %v491, 1
    %v493 = vmax.f32 %v491, %v492
    %v494 = vsel %vm263, %v483, -inf
    %v495 = vsel %vm263, %v484, -inf
    %v496 = vmax.f32 %v494, %v495
    %v497 = vrot.slane %v496, 4
    %v498 = vmax.f32 %v496, %v497
    %v499 = vrot.slane %v498, 2
    %v500 = vmax.f32 %v498, %v499
    %v501 = vrot.slane %v500, 1
    %v502 = vmax.f32 %v500, %v501
    %v503 = vld [vmem:[#allocation7] sm:$0xff]
    %v504 = vld [vmem:[#allocation7 + $0x8] sm:$0xff]
    %v505 = vld [vmem:[#allocation7 + $0x10] sm:$0xff]
    %v506 = vld [vmem:[#allocation7 + $0x18] sm:$0xff]
    %v507 = vld [vmem:[#allocation7 + $0x20] sm:$0xff]
    %v508 = vld [vmem:[#allocation7 + $0x28] sm:$0xff]
    %v509 = vld [vmem:[#allocation7 + $0x30] sm:$0xff]
    %v510 = vld [vmem:[#allocation7 + $0x38] sm:$0xff]
    %v511 = vld [vmem:[#allocation7 + $0x40] sm:$0xff]
    %v512 = vld [vmem:[#allocation7 + $0x48] sm:$0xff]
    %v513 = vld [vmem:[#allocation7 + $0x50] sm:$0xff]
    %v514 = vld [vmem:[#allocation7 + $0x58] sm:$0xff]
    %v515 = vld [vmem:[%s4] sm:$0x1]
    %v517 = vlaneseq
    %v518 = vshrl.u32 %v517, 7
    %v519 = vsub.s32 0, %v518
    %v520 = vrot.slane %v515, %v519
    %vm524 = vcmask 1041409
    %v525 = vsel %vm524, %v502, %v493
    %v526 = vsel %vm263, %v525, 0
    %528 = vmatprep.subr.mxu0 0.0
    %529 = vmatpush1.msra.mxu0 %v503
    %530 = vmatprep.subr.mxu0 0.0
    %531 = vmatpush1.msra.mxu0 %v504
    %532 = vmatprep.subr.mxu0 0.0
    %533 = vmatpush1.msra.mxu0 %v505
    %534 = vmatprep.subr.mxu0 0.0
    %535 = vmatpush1.msra.mxu0 %v506
    %536 = vmatprep.subr.mxu0 0.0
    %537 = vmatpush1.msra.mxu0 %v507
    %538 = vmatprep.subr.mxu0 0.0
    %539 = vmatpush1.msra.mxu0 %v508
    %540 = vmatprep.subr.mxu0 0.0
    %541 = vmatpush1.msra.mxu0 %v509
    %542 = vmatprep.subr.mxu0 0.0
    %543 = vmatpush1.msra.mxu0 %v510
    %544 = vmatprep.subr.mxu0 0.0
    %545 = vmatpush1.msra.mxu0 %v511
    %546 = vmatprep.subr.mxu0 0.0
    %547 = vmatpush1.msra.mxu0 %v512
    %548 = vmatprep.subr.mxu0 0.0
    %549 = vmatpush1.msra.mxu0 %v513
    %550 = vmatprep.subr.mxu0 0.0
    %551 = vmatpush1.msra.mxu0 %v514
    %552 = vmatprep.subr.mxu0 0.0
    %553 = vmatpush1.msra.mxu0 0.0
    %554 = vmatprep.subr.mxu0 0.0
    %555 = vmatpush1.msra.mxu0 0.0
    %556 = vmatprep.subr.mxu0 0.0
    %557 = vmatpush1.msra.mxu0 0.0
    %558 = vmatprep.subr.mxu0 0.0
    %559 = vmatpush1.msra.mxu0 0.0
    %560 = vmatprep.subr.mxu0 0.0
    %561 = vmatpush1.msra.mxu0 0.0
    %562 = vmatprep.subr.mxu0 0.0
    %563 = vmatpush1.msra.mxu0 0.0
    %564 = vmatprep.subr.mxu0 0.0
    %565 = vmatpush1.msra.mxu0 0.0
    %566 = vmatprep.subr.mxu0 0.0
    %567 = vmatpush1.msra.mxu0 0.0
    %568 = vmatprep.subr.mxu0 0.0
    %569 = vmatpush1.msra.mxu0 0.0
    %570 = vmatprep.subr.mxu0 0.0
    %571 = vmatpush1.msra.mxu0 0.0
    %572 = vmatprep.subr.mxu0 0.0
    %573 = vmatpush1.msra.mxu0 0.0
    %574 = vmatprep.subr.mxu0 0.0
    %575 = vmatpush1.msra.mxu0 0.0
    %576 = vmatprep.subr.mxu0 0.0
    %577 = vmatpush1.msra.mxu0 0.0
    %578 = vmatprep.subr.mxu0 0.0
    %579 = vmatpush1.msra.mxu0 0.0
    %580 = vmatprep.subr.mxu0 0.0
    %581 = vmatpush1.msra.mxu0 0.0
    %582 = vmatprep.subr.mxu0 0.0
    %583 = vmatpush1.msra.mxu0 0.0
    %584 = vmatprep.subr.mxu0 0.0
    %585 = vmatpush1.msra.mxu0 0.0
    %586 = vmatprep.subr.mxu0 0.0
    %587 = vmatpush1.msra.mxu0 0.0
    %588 = vmatprep.subr.mxu0 0.0
    %589 = vmatpush1.msra.mxu0 0.0
    %590 = vmatprep.subr.mxu0 0.0
    %591 = vmatpush1.msra.mxu0 0.0
    %592 = vmatprep.mubr.f32.mxu0 0.0
    %593 = vmatmul.mubr.f32.gmra.mrb[0].mxu0 %v526
    %v594 = vpop.f32.mrb[0].mxu0
    %v595 = vadd.f32 %v520, %v594
    %v596 = vpop.f32.mrb[0].mxu0
    %597 = vdwg.mxu0
    %598 = vst [vmem:[#allocation8] sm:$0x3] %v595
    // Predicated region
    $region34: #{tpu_custom_call.1} parent=1 // pred_check
      _
    $region35: #{tpu_custom_call.1} parent=1 // pred_check_branch
      %600 = sbr.rel (0) target = $region37
    $region36: #{tpu_custom_call.1} parent=1 // pred_region
      %s602 = ssub.s32 32, 32
      %603 = vsyncadd [#allocation4], %s602
      %s605 = sshll.u32 [#allocation8], 4
      %s606 = int_to_ptr.vmem [resolvable:$true] %s605
      %608 = dma.vmem_to_hbm [thread:$0]  %s606, 32, %s5, [#allocation4]
    $region37: #{tpu_custom_call.1} parent=1 // pred_fallthru
      _
    // Predicated region
    $region38: #{tpu_custom_call.1} parent=1 // pred_check
      _
    $region39: #{tpu_custom_call.1} parent=1 // pred_check_branch
      %610 = sbr.rel (0) target = $region41
    $region40: #{tpu_custom_call.1} parent=1 // pred_region
      %611 = dma.done [#allocation4], 32
    $region41: #{tpu_custom_call.1} parent=1 // pred_fallthru
      _
    %612 = vsyncpa [#allocation3], 1
    %613 = vsyncpa [#allocation6], 1
    %614 = vsyncpa [#allocation4], 1

</llo_original>
